<compile_context>
chip_gen: v6e
topology: v6e:2x2x1
jax: 0.10.0
libtpu: 0.0.40
codegen_flags: <defaults>
</compile_context>

<pallas_src>
import functools

import jax
import jax.numpy as jnp
from jax import lax
from jax.experimental import pallas as pl
from jax.experimental.pallas import tpu as pltpu

EPS = 1e-10


# ---------------------------------------------------------------------------
# helpers
# ---------------------------------------------------------------------------
def _round_up(x, m):
    return ((x + m - 1) // m) * m


def _round_down(x, m):
    return (x // m) * m


def _cdiv(a, b):
    return (a + b - 1) // b


def _min_rows(itemsize):
    # Minimum sublane tile for packed dtypes: f32 -> 8, bf16 -> 16, int8/fp8 -> 32.
    return {4: 8, 2: 16, 1: 32}.get(itemsize, 8)


def _hw_params():
    """(vmem_capacity_bytes_per_core, tensorcores_per_chip) with safe fallbacks."""
    vmem = None
    try:
        info = pltpu.get_tpu_info()
        v = int(getattr(info, "vmem_capacity_bytes", 0) or 0)
        if v > 0:
            vmem = v
    except Exception:
        pass

    kind = ""
    try:
        kind = jax.devices()[0].device_kind.lower()
    except Exception:
        pass

    single_tc = any(t in kind for t in ("v5e", "v5 lite", "v5lite",
                                        "v6e", "v6 lite", "v6lite"))
    is_v7 = ("v7" in kind) or ("tpu7" in kind.replace(" ", ""))

    if vmem is None:
        vmem = (128 << 20) if single_tc else (64 << 20)   # conservative fallback
    if is_v7:
        vmem = min(vmem, 64 << 20)                        # v7x: 64 MiB per core

    num_tc = 1 if single_tc else 2
    return vmem, num_tc


def _budget_and_target(vmem_cap):
    """Total VMEM footprint budget and target input-block size (bytes)."""
    # Footprint = 2x double-buffered (in + out) DMA buffers + ~2 f32 temporaries.
    budget = min((vmem_cap * 5) // 8, 72 << 20)     # ~40 MiB v7x, 72 MiB on 128-MiB chips
    target_block = (7 << 20) if vmem_cap <= (80 << 20) else (12 << 20)
    return budget, target_block


def _choose_tm(N, D, in_item, per_elem, min_rows, budget, target_block, num_tc):
    """Row tile for the single-pass path (block = (tm, full D))."""
    max_tm = max(min_rows, budget // max(1, D * per_elem))
    target_tm = max(min_rows, target_block // max(1, D * in_item))
    tm = max(min_rows, _round_down(min(max_tm, target_tm), min_rows))

    if num_tc == 2 and N >= 2 * min_rows:
        # Give both TensorCores work and keep the step count even (balance).
        tm = min(tm, _round_up(_cdiv(N, 2), min_rows))
        steps = _cdiv(N, tm)
        if steps > 1 and steps % 2 == 1:
            tm2 = max(min_rows, _round_up(_cdiv(N, steps + 1), min_rows))
            if _cdiv(N, tm2) % 2 == 0:
                tm = tm2

    if tm >= N:
        tm = N          # single block equal to the full array: no partial rows
    return tm


def _choose_split_tiles(N, D, in_item, out_item, min_rows, budget, tm=None, td=None):
    """Tiles for the wide-D two-pass fallback."""
    per_elem = 2 * in_item + 2 * out_item + 8
    if td is None:
        td = _round_down(budget // max(1, min_rows * per_elem), 128)
    else:
        td = _round_down(max(int(td), 128), 128)
    td = max(128, td)

    if tm is None:
        tm = _round_down(budget // max(1, td * per_elem), min_rows)
    else:
        tm = _round_up(int(tm), min_rows)
    tm = max(min_rows, tm)
    if tm >= N:
        tm = N
    return tm, td


# ---------------------------------------------------------------------------
# kernels
# ---------------------------------------------------------------------------
def _l2norm_kernel(x_ref, o_ref):
    """Single-pass: full feature dim D resident per block."""
    xf = x_ref[...].astype(jnp.float32)                     # (tm, D) f32
    ssq = jnp.sum(xf * xf, axis=-1, keepdims=True)          # (tm, 1) f32
    inv = lax.rsqrt(ssq + EPS)                              # EUP rsqrt
    o_ref[...] = (xf * inv).astype(o_ref.dtype)


def _ssq_kernel(x_ref, inv_ref, *, d_total, td):
    """Wide-D pass 1: accumulate sum-of-squares over D chunks -> inverse norm."""
    k = pl.program_id(1)

    @pl.when(k == 0)
    def _():
        inv_ref[...] = jnp.zeros_like(inv_ref)

    xf = x_ref[...].astype(jnp.float32)                     # (tm, td) f32
    # Mask columns past D in the (possibly partial) last chunk.
    col = k * td + lax.broadcasted_iota(jnp.int32, xf.shape, 1)
    xf = jnp.where(col < d_total, xf, 0.0)
    inv_ref[...] += jnp.sum(xf * xf, axis=-1, keepdims=True)

    @pl.when(k == pl.num_programs(1) - 1)
    def _():
        inv_ref[...] = lax.rsqrt(inv_ref[...] + EPS)


def _scale_kernel(x_ref, inv_ref, o_ref):
    """Wide-D pass 2: scale each chunk by the precomputed inverse norm."""
    o_ref[...] = (x_ref[...].astype(jnp.float32) * inv_ref[...]).astype(o_ref.dtype)


# ---------------------------------------------------------------------------
# wrapper
# ---------------------------------------------------------------------------
def l2norm(x, *, tm=None, td=None):
    """Row-wise L2 normalization of a [N, D] array (matches L2Norm.forward)."""
    assert x.ndim == 2, "L2Norm kernel expects a 2-D [N, D] input"
    N, D = x.shape
    in_item = x.dtype.itemsize
    out_item = in_item
    min_rows = _min_rows(in_item)

    vmem_cap, num_tc = _hw_params()
    budget, target_block = _budget_and_target(vmem_cap)
    vmem_limit = int(min(max(32 << 20, vmem_cap - (8 << 20)), 120 << 20))

    per_elem = 2 * in_item + 2 * out_item + 8   # dbl-buffered in+out DMA + ~2 f32 temps

    # ---------------- single-pass path: block = (tm, full D) ----------------
    if td is None and min_rows * D * per_elem <= budget:
        if tm is None:
            tm = _choose_tm(N, D, in_item, per_elem, min_rows, budget,
                            target_block, num_tc)
        else:
            tm = N if tm >= N else max(min_rows, _round_up(int(tm), min_rows))

        grid = (_cdiv(N, tm),)
        return pl.pallas_call(
            _l2norm_kernel,
            out_shape=jax.ShapeDtypeStruct((N, D), x.dtype),
            grid_spec=pltpu.PrefetchScalarGridSpec(
                num_scalar_prefetch=0,
                grid=grid,
                in_specs=[pl.BlockSpec((tm, D), lambda i: (i, 0))],
                out_specs=pl.BlockSpec((tm, D), lambda i: (i, 0)),
            ),
            compiler_params=pltpu.CompilerParams(
                dimension_semantics=("parallel",),
                vmem_limit_bytes=vmem_limit,
            ),
        )(x)

    # ---------------- wide-D fallback: two passes over D chunks -------------
    tm_s, td_s = _choose_split_tiles(N, D, in_item, out_item, min_rows, budget,
                                     tm=tm, td=td)
    grid = (_cdiv(N, tm_s), _cdiv(D, td_s))

    inv = pl.pallas_call(
        functools.partial(_ssq_kernel, d_total=D, td=td_s),
        out_shape=jax.ShapeDtypeStruct((N, 1), jnp.float32),
        grid_spec=pltpu.PrefetchScalarGridSpec(
            num_scalar_prefetch=0,
            grid=grid,
            in_specs=[pl.BlockSpec((tm_s, td_s), lambda i, k: (i, k))],
            out_specs=pl.BlockSpec((tm_s, 1), lambda i, k: (i, 0)),
        ),
        compiler_params=pltpu.CompilerParams(
            dimension_semantics=("parallel", "arbitrary"),
            vmem_limit_bytes=vmem_limit,
        ),
    )(x)

    return pl.pallas_call(
        _scale_kernel,
        out_shape=jax.ShapeDtypeStruct((N, D), x.dtype),
        grid_spec=pltpu.PrefetchScalarGridSpec(
            num_scalar_prefetch=0,
            grid=grid,
            in_specs=[pl.BlockSpec((tm_s, td_s), lambda i, k: (i, k)),
                      pl.BlockSpec((tm_s, 1), lambda i, k: (i, 0))],
            out_specs=pl.BlockSpec((tm_s, td_s), lambda i, k: (i, k)),
        ),
        compiler_params=pltpu.CompilerParams(
            dimension_semantics=("parallel", "parallel"),
            vmem_limit_bytes=vmem_limit,
        ),
    )(x, inv)


def l2norm_ref(x):
    """Pure-JAX reference mirroring the PyTorch module."""
    norm = jnp.sqrt(jnp.sum(x * x, axis=1) + EPS)
    return x / norm[:, None]


# ---------------------------------------------------------------------------
# self-test
# ---------------------------------------------------------------------------
if __name__ == "__main__":
    key = jax.random.PRNGKey(0)
    k1, k2, k3, k4 = jax.random.split(key, 4)

    def check(out, x, atol=1e-5, rtol=1e-5):
        assert out.shape == x.shape and out.dtype == x.dtype
        ref = l2norm_ref(x.astype(jnp.float32))
        assert jnp.allclose(out.astype(jnp.float32), ref, atol=atol, rtol=rtol), \
            "mismatch vs reference"

    # 1) Aligned descriptor batch (single-pass, lane-aligned D).
    x = jax.random.normal(k1, (16, 256), dtype=jnp.float32)
    out = l2norm(x)
    jax.block_until_ready(out)
    check(out, x)

    # 2) Ragged shape, single full-extent block: no padding, no masking needed.
    y = jax.random.normal(k2, (13, 200), dtype=jnp.float32)
    out = l2norm(y)
    jax.block_until_ready(out)
    check(out, y)

    # 3) Multi-step grid with a partial last row block (OOB rows discarded).
    z = jax.random.normal(k3, (37, 256), dtype=jnp.float32)
    out = l2norm(z, tm=16)
    jax.block_until_ready(out)
    check(out, z)

    # 4) Force the wide-D two-pass fallback (D chunked, partial chunk masked).
    out = l2norm(y, td=128)
    jax.block_until_ready(out)
    check(out, y)

    # 5) bf16 input (packed dtype: 16-row minimum sublane tile, f32 math inside).
    w = jax.random.normal(k4, (24, 256), dtype=jnp.float32).astype(jnp.bfloat16)
    out = l2norm(w)
    jax.block_until_ready(out)
    check(out, w, atol=1e-2, rtol=2e-2)

    print("KERNEL_OK")
</pallas_src>

<mosaic_0001>
module attributes {stable_mosaic.version = 11 : i64} {
  func.func @_l2norm_kernel(%arg0: i32, %arg1: memref<8x256xf32, #tpu.memory_space<vmem>>, %arg2: memref<8x256xf32, #tpu.memory_space<vmem>>) attributes {dimension_semantics = [#tpu.dimension_semantics<parallel>], iteration_bounds = array<i64: 2>, scalar_prefetch = 0 : i64, scratch_operands = 0 : i64, tpu.core_type = #tpu.core_type<tc>, window_params = [{transform_indices = @transform_0, window_bounds = array<i64: 8, 256>}, {transform_indices = @transform_1, window_bounds = array<i64: 8, 256>}]} {
    %c0 = arith.constant 0 : index
    %c0_0 = arith.constant 0 : index
    %0 = vector.load %arg1[%c0, %c0_0] : memref<8x256xf32, #tpu.memory_space<vmem>>, vector<8x256xf32>
    %1 = arith.mulf %0, %0 : vector<8x256xf32>
    %cst = arith.constant dense<0.000000e+00> : vector<8xf32>
    %2 = vector.multi_reduction <add>, %1, %cst [1] : vector<8x256xf32> to vector<8xf32>
    %3 = vector.shape_cast %2 : vector<8xf32> to vector<8x1xf32>
    %cst_1 = arith.constant 1.000000e-10 : f32
    %4 = vector.broadcast %cst_1 : f32 to vector<8x1xf32>
    %5 = arith.addf %3, %4 : vector<8x1xf32>
    %6 = math.rsqrt %5 : vector<8x1xf32>
    %7 = vector.broadcast %6 : vector<8x1xf32> to vector<8x256xf32>
    %8 = arith.mulf %0, %7 : vector<8x256xf32>
    %c0_2 = arith.constant 0 : index
    %c0_3 = arith.constant 0 : index
    %9 = vector.load %arg2[%c0_2, %c0_3] : memref<8x256xf32, #tpu.memory_space<vmem>>, vector<8x256xf32>
    tpu.vector_store %arg2[%c0_2, %c0_3], %8 {strides = array<i32>} : memref<8x256xf32, #tpu.memory_space<vmem>>, vector<8x256xf32>,
    return
  }
  func.func @transform_0(%arg0: i32) -> (i32, i32) {
    %c0_i32 = arith.constant 0 : i32
    %c0_i32_0 = arith.constant 0 : i32
    return %arg0, %c0_i32 : i32, i32
  }
  func.func @transform_1(%arg0: i32) -> (i32, i32) {
    %c0_i32 = arith.constant 0 : i32
    %c0_i32_0 = arith.constant 0 : i32
    return %arg0, %c0_i32 : i32, i32
  }
}

</mosaic_0001>

<llo_original>
// kernel: tpu_custom_call.1
$region0: #{tpu_custom_call.1}
  #allocation0 [shape = 'u32[]', space=smem, size = 0x4, offset = 0x4, fixed_abs, tag = 'smem constant byte address 0x4 - core index']
  #allocation1 [shape = 'u32[144,128]{1,0:T(1,128)}', space=vmem, size = 0x12000, scoped, tag = 'internal scratch']
  %s0 = inlined_call_operand.hbm [shape: f32[16,256], index: 0, kind: input, shape index: {}]
  %s1 = inlined_call_operand.hbm [shape: f32[16,256], index: 1, kind: output, shape index: {}]
  %s2 = sld [smem:[#allocation0]]
  $region41: #{tpu_custom_call.1} parent=0
    _
  %s4 = ssub.s32 1, %s2
  %s5 = scalar_select 0, %s4, %s2
  $region1: #{tpu_custom_call.1} parent=0
    #allocation2 [shape = 'u8[16384]{0}', space=vmem, size = 0x4000, scoped, tag = 'input window, operand 0']
    #allocation3 [shape = 's32[2]{0}', space=sflag, size = 0x8, scoped, tag = 'scoped memory for tpu_custom_call.1']
    #allocation4 [shape = 's32[2]{0}', space=sflag, size = 0x8, scoped, tag = 'scoped memory for tpu_custom_call.1']
    #allocation5 [shape = 'u8[16384]{0}', space=vmem, size = 0x4000, scoped, tag = 'output window, operand 0']
    %6 = vsyncpa [#allocation3], 0
    %s7 = scalar_lea.sflag [#allocation3], 1
    %8 = vsyncpa %s7, 0
    %9 = vsyncpa [#allocation4], 0
    %s10 = scalar_lea.sflag [#allocation4], 1
    %11 = vsyncpa %s10, 0
    loop: start=0, step=1, limit=4
    $region2: #{tpu_custom_call.1} parent=1 // loop_pre_header
      _
    $region3: #{tpu_custom_call.1} parent=1 // loop_header
      %s13 = sphi 0, %s17
      %p14 = scmp.ge.s32.totalorder %s13, 4
      %s23 = sphi 0, %s25
      %s26 = sphi 0, %s23
      %s27 = sphi 0, %s26
      %s43 = sphi 0, %s27
      %s49 = sphi 0, %s51
      %s52 = sphi 0, %s49
      %s53 = sphi 0, %s52
      %s69 = sphi 0, %s53
    $region4: #{tpu_custom_call.1} parent=1 // loop_header_branch
      %16 = sbr.rel (%p14) target = $region8
    $region5: #{tpu_custom_call.1} parent=1 // loop_body
      %s18 = ssub.s32 %s13, 1
      %s19 = ssub.s32 %s13, 2
      %s20 = sadd.s32 %s13, 1
      %s21 = ssub.s32 %s13, %s20
      %p22 = scmp.eq.s32.totalorder %s21, 0
      %s24 = sadd.s32 %s23, 1
      %s25 = scalar_select %p22, %s23, %s24
      %p28 = pneg %p22
      %p29 = scmp.eq.s32.totalorder %s13, 1
      %p30 = por %p28, %p29
      %p31 = scmp.ne.s32.totalorder %s23, %s26
      %p32 = scmp.eq.s32.totalorder %s13, 0
      %p33 = por %p31, %p32
      %p34 = scmp.ne.s32.totalorder %s23, %s26
      %p35 = scmp.eq.s32.totalorder %s18, 1
      %p36 = por %p34, %p35
      %p37 = scmp.ne.s32.totalorder %s26, %s27
      %p38 = scmp.eq.s32.totalorder %s18, 0
      %p39 = por %p37, %p38
      %p40 = scmp.ne.s32.totalorder %s26, %s27
      %p41 = scmp.eq.s32.totalorder %s19, 1
      %p42 = por %p40, %p41
      %p44 = scmp.ne.s32.totalorder %s27, %s43
      %p45 = scmp.eq.s32.totalorder %s19, 0
      %p46 = por %p44, %p45
      %s47 = ssub.s32 %s13, %s20
      %p48 = scmp.eq.s32.totalorder %s47, 0
      %s50 = sadd.s32 %s49, 1
      %s51 = scalar_select %p48, %s49, %s50
      %p54 = pneg %p48
      %p55 = scmp.eq.s32.totalorder %s13, 1
      %p56 = por %p54, %p55
      %p57 = scmp.ne.s32.totalorder %s49, %s52
      %p58 = scmp.eq.s32.totalorder %s13, 0
      %p59 = por %p57, %p58
      %p60 = scmp.ne.s32.totalorder %s49, %s52
      %p61 = scmp.eq.s32.totalorder %s18, 1
      %p62 = por %p60, %p61
      %p63 = scmp.ne.s32.totalorder %s52, %s53
      %p64 = scmp.eq.s32.totalorder %s18, 0
      %p65 = por %p63, %p64
      %p66 = scmp.ne.s32.totalorder %s52, %s53
      %p67 = scmp.eq.s32.totalorder %s19, 1
      %p68 = por %p66, %p67
      %p70 = scmp.ne.s32.totalorder %s53, %s69
      %p71 = scmp.eq.s32.totalorder %s19, 0
      %p72 = por %p70, %p71
      %p73 = scmp.le.s32.totalorder 1, %s13
      %p74 = scmp.lt.s32.totalorder %s13, 3
      %p75 = pnand %p73, %p74
      %p76 = pneg %p75
      // Predicated region
      $region9: #{tpu_custom_call.1} parent=5 // pred_check
        _
      $region10: #{tpu_custom_call.1} parent=5 // pred_check_branch
        %78 = sbr.rel (%p75) target = $region12
      $region11: #{tpu_custom_call.1} parent=5 // pred_region
        %s79 = ssub.s32 %s13, 1
      $region12: #{tpu_custom_call.1} parent=5 // pred_fallthru
        _
      %p80 = scmp.lt.s32.totalorder %s13, 2
      // Predicated region
      $region13: #{tpu_custom_call.1} parent=5 // pred_check
        %p81 = pneg %p80
      $region14: #{tpu_custom_call.1} parent=5 // pred_check_branch
        %83 = sbr.rel (%p81) target = $region16
      $region15: #{tpu_custom_call.1} parent=5 // pred_region
        // Predicated region
        $region17: #{tpu_custom_call.1} parent=15 // pred_check
          %p84 = pneg %p33
        $region18: #{tpu_custom_call.1} parent=15 // pred_check_branch
          %86 = sbr.rel (%p84) target = $region20
        $region19: #{tpu_custom_call.1} parent=15 // pred_region
          %s87 = sand.u32 %s23, 1
          %s88 = scalar_lea.sflag [#allocation3], %s87
          %s89 = sand.u32 %s23, 1
          %s90 = smul.addr %s89, 16
          %s91 = scalar_lea.vmem [#allocation2], %s90
          %s93 = ssub.s32 256, 256
          %94 = vsyncadd %s88, %s93
          %s95 = smul.addr %s13, 2
          %s96 = smul.addr %s95, 128
          %s97 = scalar_lea.hbm %s0, %s96
          %s99 = sshll.u32 %s91, 4
          %s100 = int_to_ptr.vmem [resolvable:$true] %s99
          %102 = dma.hbm_to_vmem [thread:$0]  %s97, 256, %s100, %s88
        $region20: #{tpu_custom_call.1} parent=15 // pred_fallthru
          _
      $region16: #{tpu_custom_call.1} parent=5 // pred_fallthru
        _
      %p103 = scmp.le.s32.totalorder 1, %s13
      %p104 = scmp.lt.s32.totalorder %s13, 3
      %p105 = pnand %p103, %p104
      %p106 = pneg %p105
      // Predicated region
      $region21: #{tpu_custom_call.1} parent=5 // pred_check
        _
      $region22: #{tpu_custom_call.1} parent=5 // pred_check_branch
        %108 = sbr.rel (%p105) target = $region24
      $region23: #{tpu_custom_call.1} parent=5 // pred_region
        %s109 = ssub.s32 %s13, 1
        %s110 = sand.u32 %s26, 1
        %s111 = scalar_lea.sflag [#allocation3], %s110
        %s112 = sand.u32 %s26, 1
        %s113 = smul.addr %s112, 16
        %s114 = scalar_lea.vmem [#allocation2], %s113
        // Predicated region
        $region25: #{tpu_custom_call.1} parent=23 // pred_check
          %p115 = pneg %p39
        $region26: #{tpu_custom_call.1} parent=23 // pred_check_branch
          %117 = sbr.rel (%p115) target = $region28
        $region27: #{tpu_custom_call.1} parent=23 // pred_region
          %118 = dma.done %s111, 256
        $region28: #{tpu_custom_call.1} parent=23 // pred_fallthru
          _
        %s119 = sand.u32 %s26, 1
        %s120 = scalar_lea.sflag [#allocation3], %s119
        %s121 = sand.u32 %s26, 1
        %s122 = smul.addr %s121, 16
        %s123 = scalar_lea.vmem [#allocation2], %s122
        %p124 = pneg %p39
        %p125 = pneg %p36
        %p126 = pneg %p65
        %p127 = pneg %p62
        %s128 = sand.u32 %s52, 1
        %s129 = scalar_lea.sflag [#allocation4], %s128
        %s130 = sand.u32 %s52, 1
        %s131 = smul.addr %s130, 16
        %s132 = scalar_lea.vmem [#allocation5], %s131
        %v133 = vld [vmem:[%s114] sm:$0xff]
        %v134 = vld [vmem:[%s114 + $0x8] sm:$0xff]
        %v135 = vmul.f32 %v133, %v133
        %v136 = vmul.f32 %v134, %v134
        %v137 = vadd.f32 %v135, %v136
        %138 = vadd.xlane.f32.xlu0 %v137
        %v139 = vpop.xlane.xlu0 %138
        %v140 = vadd.f32 %v139, 1e-10
        %v141 = vrsqrt.pop %v140
        %v142 = vmul.f32 %v133, %v141
        %v143 = vmul.f32 %v134, %v141
        %144 = vst [vmem:[%s132] sm:$0xff] %v142
        %145 = vst [vmem:[%s132 + $0x8] sm:$0xff] %v143
        %s146 = sand.u32 %s52, 1
        %s147 = scalar_lea.sflag [#allocation4], %s146
        %s148 = sand.u32 %s52, 1
        %s149 = smul.addr %s148, 16
        %s150 = scalar_lea.vmem [#allocation5], %s149
        // Predicated region
        $region29: #{tpu_custom_call.1} parent=23 // pred_check
          %p151 = pneg %p62
        $region30: #{tpu_custom_call.1} parent=23 // pred_check_branch
          %153 = sbr.rel (%p151) target = $region32
        $region31: #{tpu_custom_call.1} parent=23 // pred_region
          %s155 = ssub.s32 256, 256
          %156 = vsyncadd %s147, %s155
          %s157 = smul.addr %s18, 2
          %s158 = smul.addr %s157, 128
          %s159 = scalar_lea.hbm %s1, %s158
          %s161 = sshll.u32 %s150, 4
          %s162 = int_to_ptr.vmem [resolvable:$true] %s161
          %164 = dma.vmem_to_hbm [thread:$0]  %s162, 256, %s159, %s147
        $region32: #{tpu_custom_call.1} parent=23 // pred_fallthru
          _
      $region24: #{tpu_custom_call.1} parent=5 // pred_fallthru
        _
      %p165 = scmp.le.s32.totalorder 2, %s13
      // Predicated region
      $region33: #{tpu_custom_call.1} parent=5 // pred_check
        %p166 = pneg %p165
      $region34: #{tpu_custom_call.1} parent=5 // pred_check_branch
        %168 = sbr.rel (%p166) target = $region36
      $region35: #{tpu_custom_call.1} parent=5 // pred_region
        %s169 = ssub.s32 %s13, 2
        // Predicated region
        $region37: #{tpu_custom_call.1} parent=35 // pred_check
          %p170 = pneg %p68
        $region38: #{tpu_custom_call.1} parent=35 // pred_check_branch
          %172 = sbr.rel (%p170) target = $region40
        $region39: #{tpu_custom_call.1} parent=35 // pred_region
          %s173 = sand.u32 %s53, 1
          %s174 = scalar_lea.sflag [#allocation4], %s173
          %s175 = sand.u32 %s53, 1
          %s176 = smul.addr %s175, 16
          %s177 = scalar_lea.vmem [#allocation5], %s176
          %178 = dma.done %s174, 256
        $region40: #{tpu_custom_call.1} parent=35 // pred_fallthru
          _
      $region36: #{tpu_custom_call.1} parent=5 // pred_fallthru
        _
    $region6: #{tpu_custom_call.1} parent=1 // loop_footer
      %s17 = sadd.s32 1, %s13
    $region7: #{tpu_custom_call.1} parent=1 // loop_footer_branch
      %12 = sbr.rel target = $region3
    $region8: #{tpu_custom_call.1} parent=1 // loop_exit
      _
    %179 = vsyncpa [#allocation3], 1
    %s180 = scalar_lea.sflag [#allocation3], 1
    %181 = vsyncpa %s180, 1
    %182 = vsyncpa [#allocation4], 1
    %s183 = scalar_lea.sflag [#allocation4], 1
    %184 = vsyncpa %s183, 1

</llo_original>
